<compile_context>
chip_gen: v6e
topology: v6e:2x2x1
jax: 0.10.0
libtpu: 0.0.40
codegen_flags: <defaults>
</compile_context>

<pallas_src>
import functools

import jax
import jax.numpy as jnp
from jax import lax
from jax.experimental import pallas as pl
from jax.experimental.pallas import tpu as pltpu


def _round_up(x, m):
    return (x + m - 1) // m * m


def mlp_kernel(x_ref, w1_ref, b1_ref, w2_ref, b2_ref, w3_ref, b3_ref, o_ref):
    # x_ref: (TB, 30) -- native layout, batch on sublanes in VMEM.
    # w1: (8, 30)  b1: (8, 1)   w2: (64, 8)  b2: (64, 1)   w3: (1, 64)  b3: (1, 1)
    #
    # Layer 1: contract feature dims of both operands (lhs dim 1, rhs dim 1).
    # Result h1 is (8, TB): batch moves onto the 128-lane axis with no explicit
    # big transpose and no wrapper-side relayout of x.
    h1 = lax.dot_general(
        w1_ref[...], x_ref[...],
        dimension_numbers=(((1,), (1,)), ((), ())),
        preferred_element_type=jnp.float32)                     # (8, TB)
    h1 = jnp.maximum(h1 + b1_ref[...], 0.0)
    # Layer 2: Linear(8 -> 64) + ReLU, batch stays on lanes.    # (64, TB)
    h2 = jnp.dot(w2_ref[...], h1, preferred_element_type=jnp.float32)
    h2 = jnp.maximum(h2 + b2_ref[...], 0.0)
    # Output: Linear(64 -> 1) + Sigmoid -> lane-dense (1, TB) store.
    logits = jnp.dot(w3_ref[...], h2, preferred_element_type=jnp.float32)
    o_ref[...] = jax.nn.sigmoid(logits + b3_ref[...])


@functools.partial(jax.jit, static_argnames=("tb_max",))
def nn_model_forward(x, params, *, tb_max=8192):
    """x: (B, 30) float32. params in PyTorch nn.Linear layout: (out, in) / (out,)."""
    w1, b1, w2, b2, w3, b3 = params
    B, F = x.shape

    # Batch tile: lane-aligned (multiple of 128), capped by tb_max, big enough to
    # amortize the ~0.35us/step pipeline overhead at the default cap (~1 MiB/block).
    TB = min(_round_up(tb_max, 128), _round_up(B, 128))
    if pl.cdiv(B, TB) < 2 and TB > 128:
        # v7x has 2 TensorCores per chip: make sure the "parallel" batch grid has
        # at least 2 steps to shard whenever the batch is large enough to split.
        TB = _round_up(TB // 2, 128)
    n_steps = pl.cdiv(B, TB)

    b1c = b1.reshape(-1, 1)   # (8, 1)  broadcast over lanes (batch)
    b2c = b2.reshape(-1, 1)   # (64, 1)
    b3c = b3.reshape(-1, 1)   # (1, 1)

    const = lambda i: (0, 0)  # weights/biases: DMA'd once, stay VMEM-resident
    out = pl.pallas_call(
        mlp_kernel,
        out_shape=jax.ShapeDtypeStruct((1, B), jnp.float32),
        grid=(n_steps,),
        in_specs=[
            pl.BlockSpec((TB, F), lambda i: (i, 0)),   # x row-blocks stream / double-buffer
            pl.BlockSpec((8, F), const),
            pl.BlockSpec((8, 1), const),
            pl.BlockSpec((64, 8), const),
            pl.BlockSpec((64, 1), const),
            pl.BlockSpec((1, 64), const),
            pl.BlockSpec((1, 1), const),
        ],
        out_specs=pl.BlockSpec((1, TB), lambda i: (0, i)),
        compiler_params=pltpu.CompilerParams(
            dimension_semantics=("parallel",),          # shard batch steps across TCs (v7x)
            vmem_limit_bytes=32 * 1024 * 1024,          # headroom for big tiles on v5e too
        ),
    )(x, w1, b1c, w2, b2c, w3, b3c)
    # Return PyTorch-shaped (B, 1) output.
    return out[0, :].reshape(B, 1)


def reference_forward(x, params):
    w1, b1, w2, b2, w3, b3 = params
    h = jnp.maximum(x @ w1.T + b1, 0.0)
    h = jnp.maximum(h @ w2.T + b2, 0.0)
    return jax.nn.sigmoid(h @ w3.T + b3)


def init_params(key):
    # Deterministic init mimicking nn.Linear's uniform(-1/sqrt(fan_in), 1/sqrt(fan_in)),
    # stored in PyTorch layout (out_features, in_features).
    ks = jax.random.split(key, 6)

    def uniform(k, shape, fan_in):
        bound = 1.0 / jnp.sqrt(float(fan_in))
        return jax.random.uniform(k, shape, jnp.float32, -bound, bound)

    w1 = uniform(ks[0], (8, 30), 30)
    b1 = uniform(ks[1], (8,), 30)
    w2 = uniform(ks[2], (64, 8), 8)
    b2 = uniform(ks[3], (64,), 8)
    w3 = uniform(ks[4], (1, 64), 64)
    b3 = uniform(ks[5], (1,), 64)
    return (w1, b1, w2, b2, w3, b3)


if __name__ == "__main__":
    key = jax.random.PRNGKey(0)
    pkey, xkey = jax.random.split(key)
    params = init_params(pkey)

    # Small batch: single tile, grid=(1,).
    B = 8
    x = jax.random.normal(xkey, (B, 30), dtype=jnp.float32)
    out = jax.block_until_ready(nn_model_forward(x, params))
    ref = reference_forward(x, params)
    assert out.shape == (B, 1)
    assert jnp.allclose(out, ref, atol=2e-5, rtol=2e-5)

    # Larger ragged batch with a small, non-128-multiple tile cap: TB rounds to 256,
    # grid has 2 steps (resident weights across steps, masked ragged tail block).
    B2 = 300
    x2 = jax.random.normal(jax.random.PRNGKey(1), (B2, 30), dtype=jnp.float32)
    out2 = jax.block_until_ready(nn_model_forward(x2, params, tb_max=200))
    ref2 = reference_forward(x2, params)
    assert out2.shape == (B2, 1)
    assert jnp.allclose(out2, ref2, atol=2e-5, rtol=2e-5)

    print("KERNEL_OK")
</pallas_src>

<mosaic_0001>
module attributes {stable_mosaic.version = 11 : i64} {
  func.func @mlp_kernel(%arg0: i32, %arg1: memref<128x30xf32, #tpu.memory_space<vmem>>, %arg2: memref<8x30xf32, #tpu.memory_space<vmem>>, %arg3: memref<8x1xf32, #tpu.memory_space<vmem>>, %arg4: memref<64x8xf32, #tpu.memory_space<vmem>>, %arg5: memref<64x1xf32, #tpu.memory_space<vmem>>, %arg6: memref<1x64xf32, #tpu.memory_space<vmem>>, %arg7: memref<1x1xf32, #tpu.memory_space<vmem>>, %arg8: memref<1x128xf32, #tpu.memory_space<vmem>>) attributes {dimension_semantics = [#tpu.dimension_semantics<parallel>], iteration_bounds = array<i64: 1>, scalar_prefetch = 0 : i64, scratch_operands = 0 : i64, tpu.core_type = #tpu.core_type<tc>, window_params = [{transform_indices = @transform_0, window_bounds = array<i64: 128, 30>}, {pipeline_mode = #tpu.pipeline_mode<synchronous>, transform_indices = @transform_1, window_bounds = array<i64: 8, 30>}, {pipeline_mode = #tpu.pipeline_mode<synchronous>, transform_indices = @transform_2, window_bounds = array<i64: 8, 1>}, {pipeline_mode = #tpu.pipeline_mode<synchronous>, transform_indices = @transform_3, window_bounds = array<i64: 64, 8>}, {pipeline_mode = #tpu.pipeline_mode<synchronous>, transform_indices = @transform_4, window_bounds = array<i64: 64, 1>}, {pipeline_mode = #tpu.pipeline_mode<synchronous>, transform_indices = @transform_5, window_bounds = array<i64: 1, 64>}, {pipeline_mode = #tpu.pipeline_mode<synchronous>, transform_indices = @transform_6, window_bounds = array<i64: 1, 1>}, {transform_indices = @transform_7, window_bounds = array<i64: 1, 128>}]} {
    %c0 = arith.constant 0 : index
    %c0_0 = arith.constant 0 : index
    %0 = vector.load %arg2[%c0, %c0_0] : memref<8x30xf32, #tpu.memory_space<vmem>>, vector<8x30xf32>
    %c0_1 = arith.constant 0 : index
    %c0_2 = arith.constant 0 : index
    %1 = vector.load %arg1[%c0_1, %c0_2] : memref<128x30xf32, #tpu.memory_space<vmem>>, vector<128x30xf32>
    %cst = arith.constant dense<0.000000e+00> : vector<8x128xf32>
    %2 = tpu.matmul %0, %1, %cst {dimension_numbers = #tpu.dot_dimension_numbers<[1], [1], [0], [0], [0, 0, 1, 0], [], []>} : vector<8x30xf32>, vector<128x30xf32>, vector<8x128xf32> -> vector<8x128xf32>
    %c0_3 = arith.constant 0 : index
    %c0_4 = arith.constant 0 : index
    %3 = vector.load %arg3[%c0_3, %c0_4] : memref<8x1xf32, #tpu.memory_space<vmem>>, vector<8x1xf32>
    %4 = vector.broadcast %3 : vector<8x1xf32> to vector<8x128xf32>
    %5 = arith.addf %2, %4 : vector<8x128xf32>
    %cst_5 = arith.constant 0.000000e+00 : f32
    %6 = vector.broadcast %cst_5 : f32 to vector<8x128xf32>
    %7 = arith.maximumf %5, %6 : vector<8x128xf32>
    %c0_6 = arith.constant 0 : index
    %c0_7 = arith.constant 0 : index
    %8 = vector.load %arg4[%c0_6, %c0_7] : memref<64x8xf32, #tpu.memory_space<vmem>>, vector<64x8xf32>
    %cst_8 = arith.constant dense<0.000000e+00> : vector<64x128xf32>
    %9 = tpu.matmul %8, %7, %cst_8 {dimension_numbers = #tpu.dot_dimension_numbers<[1], [0], [0], [1], [0, 0, 1, 1], [], []>} : vector<64x8xf32>, vector<8x128xf32>, vector<64x128xf32> -> vector<64x128xf32>
    %c0_9 = arith.constant 0 : index
    %c0_10 = arith.constant 0 : index
    %10 = vector.load %arg5[%c0_9, %c0_10] : memref<64x1xf32, #tpu.memory_space<vmem>>, vector<64x1xf32>
    %11 = vector.broadcast %10 : vector<64x1xf32> to vector<64x128xf32>
    %12 = arith.addf %9, %11 : vector<64x128xf32>
    %cst_11 = arith.constant 0.000000e+00 : f32
    %13 = vector.broadcast %cst_11 : f32 to vector<64x128xf32>
    %14 = arith.maximumf %12, %13 : vector<64x128xf32>
    %c0_12 = arith.constant 0 : index
    %c0_13 = arith.constant 0 : index
    %15 = vector.load %arg6[%c0_12, %c0_13] : memref<1x64xf32, #tpu.memory_space<vmem>>, vector<1x64xf32>
    %cst_14 = arith.constant dense<0.000000e+00> : vector<1x128xf32>
    %16 = tpu.matmul %15, %14, %cst_14 {dimension_numbers = #tpu.dot_dimension_numbers<[1], [0], [0], [1], [0, 0, 1, 1], [], []>} : vector<1x64xf32>, vector<64x128xf32>, vector<1x128xf32> -> vector<1x128xf32>
    %c0_15 = arith.constant 0 : index
    %c0_16 = arith.constant 0 : index
    %17 = vector.load %arg7[%c0_15, %c0_16] : memref<1x1xf32, #tpu.memory_space<vmem>>, vector<1x1xf32>
    %18 = vector.broadcast %17 : vector<1x1xf32> to vector<1x128xf32>
    %19 = arith.addf %16, %18 : vector<1x128xf32>
    %20 = arith.negf %19 : vector<1x128xf32>
    %21 = math.exp %20 : vector<1x128xf32>
    %cst_17 = arith.constant 1.000000e+00 : f32
    %22 = vector.broadcast %cst_17 : f32 to vector<1x128xf32>
    %23 = arith.addf %22, %21 : vector<1x128xf32>
    %24 = arith.divf %22, %23 : vector<1x128xf32>
    %c0_18 = arith.constant 0 : index
    %c0_19 = arith.constant 0 : index
    %25 = vector.load %arg8[%c0_18, %c0_19] : memref<1x128xf32, #tpu.memory_space<vmem>>, vector<1x128xf32>
    tpu.vector_store %arg8[%c0_18, %c0_19], %24 {strides = array<i32>} : memref<1x128xf32, #tpu.memory_space<vmem>>, vector<1x128xf32>,
    return
  }
  func.func @transform_0(%arg0: i32) -> (i32, i32) {
    %c0_i32 = arith.constant 0 : i32
    %c0_i32_0 = arith.constant 0 : i32
    return %arg0, %c0_i32 : i32, i32
  }
  func.func @transform_1(%arg0: i32) -> (i32, i32) {
    %c0_i32 = arith.constant 0 : i32
    %c0_i32_0 = arith.constant 0 : i32
    %c0_i32_1 = arith.constant 0 : i32
    return %c0_i32, %c0_i32_0 : i32, i32
  }
  func.func @transform_2(%arg0: i32) -> (i32, i32) {
    %c0_i32 = arith.constant 0 : i32
    %c0_i32_0 = arith.constant 0 : i32
    %c0_i32_1 = arith.constant 0 : i32
    return %c0_i32, %c0_i32_0 : i32, i32
  }
  func.func @transform_3(%arg0: i32) -> (i32, i32) {
    %c0_i32 = arith.constant 0 : i32
    %c0_i32_0 = arith.constant 0 : i32
    %c0_i32_1 = arith.constant 0 : i32
    return %c0_i32, %c0_i32_0 : i32, i32
  }
  func.func @transform_4(%arg0: i32) -> (i32, i32) {
    %c0_i32 = arith.constant 0 : i32
    %c0_i32_0 = arith.constant 0 : i32
    %c0_i32_1 = arith.constant 0 : i32
    return %c0_i32, %c0_i32_0 : i32, i32
  }
  func.func @transform_5(%arg0: i32) -> (i32, i32) {
    %c0_i32 = arith.constant 0 : i32
    %c0_i32_0 = arith.constant 0 : i32
    %c0_i32_1 = arith.constant 0 : i32
    return %c0_i32, %c0_i32_0 : i32, i32
  }
  func.func @transform_6(%arg0: i32) -> (i32, i32) {
    %c0_i32 = arith.constant 0 : i32
    %c0_i32_0 = arith.constant 0 : i32
    %c0_i32_1 = arith.constant 0 : i32
    return %c0_i32, %c0_i32_0 : i32, i32
  }
  func.func @transform_7(%arg0: i32) -> (i32, i32) {
    %c0_i32 = arith.constant 0 : i32
    %c0_i32_0 = arith.constant 0 : i32
    return %c0_i32, %arg0 : i32, i32
  }
}

</mosaic_0001>

<llo_original>
// kernel: nn_model_forward.1
$region0: #{nn_model_forward.1}
  #allocation0 [shape = 'u32[]', space=smem, size = 0x4, offset = 0x4, fixed_abs, tag = 'smem constant byte address 0x4 - core index']
  #allocation1 [shape = 'u32[144,128]{1,0:T(1,128)}', space=vmem, size = 0x12000, scoped, tag = 'internal scratch']
  #allocation2 [shape = 'f32[1,1]{1,0:T(1,128)S(1)}', space=vmem, size = 0x200, scoped, tag = 'scoped memory for nn_model_forward.1']
  %s0 = inlined_call_operand.vmem [shape: f32[8,30], index: 0, kind: input, shape index: {}]
  %s1 = inlined_call_operand.vmem [shape: f32[8,30], index: 1, kind: input, shape index: {}]
  %s2 = inlined_call_operand.vmem [shape: f32[8,1], index: 2, kind: input, shape index: {}]
  %s3 = inlined_call_operand.vmem [shape: f32[64,8], index: 3, kind: input, shape index: {}]
  %s4 = inlined_call_operand.vmem [shape: f32[64,1], index: 4, kind: input, shape index: {}]
  %s5 = inlined_call_operand.vmem [shape: f32[1,64], index: 5, kind: input, shape index: {}]
  %s6 = inlined_call_operand.<no memory space> [shape: f32[1,1], index: 6, kind: input, shape index: {}]
  %s7 = inlined_call_operand.hbm [shape: f32[1,8], index: 7, kind: output, shape index: {}]
  %s8 = sld [smem:[#allocation0]]
  $region38: #{nn_model_forward.1} parent=0
    _
  %s10 = ssub.s32 1, %s8
  %s11 = scalar_select 0, %s10, %s8
  %v12 = vstv %s6
  %13 = vst [vmem:[#allocation2] sm:$0x1] %v12
  $region1: #{nn_model_forward.1} parent=0
    #allocation3 [shape = 'u8[512]{0}', space=vmem, size = 0x400, scoped, tag = 'output window, operand 0, single buffered']
    #allocation4 [shape = 's32[1]{0}', space=sflag, size = 0x4, scoped, tag = 'scoped memory for nn_model_forward.1']
    %14 = vsyncpa [#allocation4], 0
    // Predicated region
    $region2: #{nn_model_forward.1} parent=1 // pred_check
      _
    $region3: #{nn_model_forward.1} parent=1 // pred_check_branch
      %16 = sbr.rel (0) target = $region5
    $region4: #{nn_model_forward.1} parent=1 // pred_region
      _
    $region5: #{nn_model_forward.1} parent=1 // pred_fallthru
      _
    // Predicated region
    $region6: #{nn_model_forward.1} parent=1 // pred_check
      _
    $region7: #{nn_model_forward.1} parent=1 // pred_check_branch
      %18 = sbr.rel (0) target = $region9
    $region8: #{nn_model_forward.1} parent=1 // pred_region
      _
    $region9: #{nn_model_forward.1} parent=1 // pred_fallthru
      _
    // Predicated region
    $region10: #{nn_model_forward.1} parent=1 // pred_check
      _
    $region11: #{nn_model_forward.1} parent=1 // pred_check_branch
      %20 = sbr.rel (0) target = $region13
    $region12: #{nn_model_forward.1} parent=1 // pred_region
      _
    $region13: #{nn_model_forward.1} parent=1 // pred_fallthru
      _
    // Predicated region
    $region14: #{nn_model_forward.1} parent=1 // pred_check
      _
    $region15: #{nn_model_forward.1} parent=1 // pred_check_branch
      %22 = sbr.rel (0) target = $region17
    $region16: #{nn_model_forward.1} parent=1 // pred_region
      _
    $region17: #{nn_model_forward.1} parent=1 // pred_fallthru
      _
    // Predicated region
    $region18: #{nn_model_forward.1} parent=1 // pred_check
      _
    $region19: #{nn_model_forward.1} parent=1 // pred_check_branch
      %24 = sbr.rel (0) target = $region21
    $region20: #{nn_model_forward.1} parent=1 // pred_region
      _
    $region21: #{nn_model_forward.1} parent=1 // pred_fallthru
      _
    // Predicated region
    $region22: #{nn_model_forward.1} parent=1 // pred_check
      _
    $region23: #{nn_model_forward.1} parent=1 // pred_check_branch
      %26 = sbr.rel (0) target = $region25
    $region24: #{nn_model_forward.1} parent=1 // pred_region
      _
    $region25: #{nn_model_forward.1} parent=1 // pred_fallthru
      _
    // Predicated region
    $region26: #{nn_model_forward.1} parent=1 // pred_check
      _
    $region27: #{nn_model_forward.1} parent=1 // pred_check_branch
      %28 = sbr.rel (0) target = $region29
    $region28: #{nn_model_forward.1} parent=1 // pred_region
      _
    $region29: #{nn_model_forward.1} parent=1 // pred_fallthru
      _
    %v29 = vld [vmem:[%s1] sm:$0xff]
    %v30 = vld [vmem:[%s0] sm:$0xff]
    %v31 = vld [vmem:[%s0 + $0x8] sm:$0xff]
    %v32 = vld [vmem:[%s0 + $0x10] sm:$0xff]
    %v33 = vld [vmem:[%s0 + $0x18] sm:$0xff]
    %v34 = vld [vmem:[%s0 + $0x20] sm:$0xff]
    %v35 = vld [vmem:[%s0 + $0x28] sm:$0xff]
    %v36 = vld [vmem:[%s0 + $0x30] sm:$0xff]
    %v37 = vld [vmem:[%s0 + $0x38] sm:$0xff]
    %v38 = vld [vmem:[%s0 + $0x40] sm:$0xff]
    %v39 = vld [vmem:[%s0 + $0x48] sm:$0xff]
    %v40 = vld [vmem:[%s0 + $0x50] sm:$0xff]
    %v41 = vld [vmem:[%s0 + $0x58] sm:$0xff]
    %v42 = vld [vmem:[%s0 + $0x60] sm:$0xff]
    %v43 = vld [vmem:[%s0 + $0x68] sm:$0xff]
    %v44 = vld [vmem:[%s0 + $0x70] sm:$0xff]
    %v45 = vld [vmem:[%s0 + $0x78] sm:$0xff]
    %v46 = vld [vmem:[%s2] sm:$0xff]
    %48 = vset.pattern.permute.xlu0 0
    %49 = vperm.xlu0 %48, %v46
    %v50 = vpop.permute.xlu0 %49
    %vm52 = vcmask 244736
    %v54 = vsel %vm52, %v29, 0
    %v57 = vsel %vm52, %v30, 0
    %v60 = vsel %vm52, %v31, 0
    %v63 = vsel %vm52, %v32, 0
    %v66 = vsel %vm52, %v33, 0
    %v69 = vsel %vm52, %v34, 0
    %v72 = vsel %vm52, %v35, 0
    %v75 = vsel %vm52, %v36, 0
    %v78 = vsel %vm52, %v37, 0
    %v81 = vsel %vm52, %v38, 0
    %v84 = vsel %vm52, %v39, 0
    %v87 = vsel %vm52, %v40, 0
    %v90 = vsel %vm52, %v41, 0
    %v93 = vsel %vm52, %v42, 0
    %v96 = vsel %vm52, %v43, 0
    %v99 = vsel %vm52, %v44, 0
    %v102 = vsel %vm52, %v45, 0
    %104 = vmatprep.subr.mxu0 0.0
    %105 = vmatpush1.xpose.msra.mxu0 %v102
    %106 = vmatprep.subr.mxu0 0.0
    %107 = vmatpush1.xpose.msra.mxu0 %v99
    %108 = vmatprep.subr.mxu0 0.0
    %109 = vmatpush1.xpose.msra.mxu0 %v96
    %110 = vmatprep.subr.mxu0 0.0
    %111 = vmatpush1.xpose.msra.mxu0 %v93
    %112 = vmatprep.subr.mxu0 0.0
    %113 = vmatpush1.xpose.msra.mxu0 %v90
    %114 = vmatprep.subr.mxu0 0.0
    %115 = vmatpush1.xpose.msra.mxu0 %v87
    %116 = vmatprep.subr.mxu0 0.0
    %117 = vmatpush1.xpose.msra.mxu0 %v84
    %118 = vmatprep.subr.mxu0 0.0
    %119 = vmatpush1.xpose.msra.mxu0 %v81
    %120 = vmatprep.subr.mxu0 0.0
    %121 = vmatpush1.xpose.msra.mxu0 %v78
    %122 = vmatprep.subr.mxu0 0.0
    %123 = vmatpush1.xpose.msra.mxu0 %v75
    %124 = vmatprep.subr.mxu0 0.0
    %125 = vmatpush1.xpose.msra.mxu0 %v72
    %126 = vmatprep.subr.mxu0 0.0
    %127 = vmatpush1.xpose.msra.mxu0 %v69
    %128 = vmatprep.subr.mxu0 0.0
    %129 = vmatpush1.xpose.msra.mxu0 %v66
    %130 = vmatprep.subr.mxu0 0.0
    %131 = vmatpush1.xpose.msra.mxu0 %v63
    %132 = vmatprep.subr.mxu0 0.0
    %133 = vmatpush1.xpose.msra.mxu0 %v60
    %134 = vmatprep.subr.mxu0 0.0
    %135 = vmatpush1.xpose.msra.mxu0 %v57
    %136 = vmatprep.subr.mxu0 0.0
    %137 = vmatpush2.xpose.msra.mxu0 0.0
    %138 = vmatprep.subr.mxu0 0.0
    %139 = vmatpush2.xpose.msra.mxu0 0.0
    %140 = vmatprep.subr.mxu0 0.0
    %141 = vmatpush2.xpose.msra.mxu0 0.0
    %142 = vmatprep.subr.mxu0 0.0
    %143 = vmatpush2.xpose.msra.mxu0 0.0
    %144 = vmatprep.subr.mxu0 0.0
    %145 = vmatpush2.xpose.msra.mxu0 0.0
    %146 = vmatprep.subr.mxu0 0.0
    %147 = vmatpush2.xpose.msra.mxu0 0.0
    %148 = vmatprep.subr.mxu0 0.0
    %149 = vmatpush2.xpose.msra.mxu0 0.0
    %150 = vmatprep.subr.mxu0 0.0
    %151 = vmatpush2.xpose.msra.mxu0 0.0
    %152 = vmatprep.subr.mxu0 0.0
    %153 = vmatpush2.xpose.msra.mxu0 0.0
    %154 = vmatprep.subr.mxu0 0.0
    %155 = vmatpush2.xpose.msra.mxu0 0.0
    %156 = vmatprep.subr.mxu0 0.0
    %157 = vmatpush2.xpose.msra.mxu0 0.0
    %158 = vmatprep.subr.mxu0 0.0
    %159 = vmatpush2.xpose.msra.mxu0 0.0
    %160 = vmatprep.subr.mxu0 0.0
    %161 = vmatpush2.xpose.msra.mxu0 0.0
    %162 = vmatprep.subr.mxu0 0.0
    %163 = vmatpush2.xpose.msra.mxu0 0.0
    %164 = vmatprep.subr.mxu0 0.0
    %165 = vmatpush2.xpose.msra.mxu0 0.0
    %166 = vmatprep.subr.mxu0 0.0
    %167 = vmatpush2.xpose.msra.mxu0 0.0
    %168 = vmatprep.mubr.f32.mxu0 0.0
    %169 = vmatmul.mubr.f32.gmra.mxu0 %v54
    %v170 = vpop.f32.mrf.mxu0
    %v171 = vadd.f32 %v50, %v170
    %v172 = vpop.f32.mrf.mxu0
    %173 = vdwg.mxu0
    %v174 = vmax.f32 %v171, 0.0
    %v175 = vld [vmem:[%s3] sm:$0xff]
    %v176 = vld [vmem:[%s3 + $0x8] sm:$0xff]
    %v177 = vld [vmem:[%s3 + $0x10] sm:$0xff]
    %v178 = vld [vmem:[%s3 + $0x18] sm:$0xff]
    %v179 = vld [vmem:[%s3 + $0x20] sm:$0xff]
    %v180 = vld [vmem:[%s3 + $0x28] sm:$0xff]
    %v181 = vld [vmem:[%s3 + $0x30] sm:$0xff]
    %v182 = vld [vmem:[%s3 + $0x38] sm:$0xff]
    %v183 = vld [vmem:[%s4] sm:$0xff]
    %v184 = vld [vmem:[%s4 + $0x8] sm:$0xff]
    %v185 = vld [vmem:[%s4 + $0x10] sm:$0xff]
    %v186 = vld [vmem:[%s4 + $0x18] sm:$0xff]
    %v187 = vld [vmem:[%s4 + $0x20] sm:$0xff]
    %v188 = vld [vmem:[%s4 + $0x28] sm:$0xff]
    %v189 = vld [vmem:[%s4 + $0x30] sm:$0xff]
    %v190 = vld [vmem:[%s4 + $0x38] sm:$0xff]
    %192 = vset.pattern.permute.xlu0 0
    %193 = vperm.xlu0 %192, %v183
    %v194 = vpop.permute.xlu0 %193
    %197 = vset.pattern.permute.xlu0 0
    %198 = vperm.xlu0 %197, %v184
    %v199 = vpop.permute.xlu0 %198
    %202 = vset.pattern.permute.xlu0 0
    %203 = vperm.xlu0 %202, %v185
    %v204 = vpop.permute.xlu0 %203
    %207 = vset.pattern.permute.xlu0 0
    %208 = vperm.xlu0 %207, %v186
    %v209 = vpop.permute.xlu0 %208
    %212 = vset.pattern.permute.xlu0 0
    %213 = vperm.xlu0 %212, %v187
    %v214 = vpop.permute.xlu0 %213
    %217 = vset.pattern.permute.xlu0 0
    %218 = vperm.xlu0 %217, %v188
    %v219 = vpop.permute.xlu0 %218
    %222 = vset.pattern.permute.xlu0 0
    %223 = vperm.xlu0 %222, %v189
    %v224 = vpop.permute.xlu0 %223
    %227 = vset.pattern.permute.xlu0 0
    %228 = vperm.xlu0 %227, %v190
    %v229 = vpop.permute.xlu0 %228
    %vm231 = vcmask 64512
    %v233 = vsel %vm231, %v175, 0
    %v236 = vsel %vm231, %v176, 0
    %v239 = vsel %vm231, %v177, 0
    %v242 = vsel %vm231, %v178, 0
    %v245 = vsel %vm231, %v179, 0
    %v248 = vsel %vm231, %v180, 0
    %v251 = vsel %vm231, %v181, 0
    %v254 = vsel %vm231, %v182, 0
    %256 = vmatprep.subr.mxu0 0.0
    %257 = vmatpush1.msra.mxu0 0.0
    %258 = vmatprep.subr.mxu0 0.0
    %259 = vmatpush1.msra.mxu0 0.0
    %260 = vmatprep.subr.mxu0 0.0
    %261 = vmatpush1.msra.mxu0 0.0
    %262 = vmatprep.subr.mxu0 0.0
    %263 = vmatpush1.msra.mxu0 0.0
    %264 = vmatprep.subr.mxu0 0.0
    %265 = vmatpush1.msra.mxu0 0.0
    %266 = vmatprep.subr.mxu0 0.0
    %267 = vmatpush1.msra.mxu0 0.0
    %268 = vmatprep.subr.mxu0 0.0
    %269 = vmatpush1.msra.mxu0 0.0
    %270 = vmatprep.subr.mxu0 0.0
    %271 = vmatpush1.msra.mxu0 0.0
    %272 = vmatprep.subr.mxu0 0.0
    %273 = vmatpush1.msra.mxu0 0.0
    %274 = vmatprep.subr.mxu0 0.0
    %275 = vmatpush1.msra.mxu0 0.0
    %276 = vmatprep.subr.mxu0 0.0
    %277 = vmatpush1.msra.mxu0 0.0
    %278 = vmatprep.subr.mxu0 0.0
    %279 = vmatpush1.msra.mxu0 0.0
    %280 = vmatprep.subr.mxu0 0.0
    %281 = vmatpush1.msra.mxu0 0.0
    %282 = vmatprep.subr.mxu0 0.0
    %283 = vmatpush1.msra.mxu0 0.0
    %284 = vmatprep.subr.mxu0 0.0
    %285 = vmatpush1.msra.mxu0 0.0
    %286 = vmatprep.subr.mxu0 0.0
    %287 = vmatpush1.msra.mxu0 %v174
    %288 = vmatprep.subr.mxu0 0.0
    %289 = vmatpush2.msra.mxu0 0.0
    %290 = vmatprep.subr.mxu0 0.0
    %291 = vmatpush2.msra.mxu0 0.0
    %292 = vmatprep.subr.mxu0 0.0
    %293 = vmatpush2.msra.mxu0 0.0
    %294 = vmatprep.subr.mxu0 0.0
    %295 = vmatpush2.msra.mxu0 0.0
    %296 = vmatprep.subr.mxu0 0.0
    %297 = vmatpush2.msra.mxu0 0.0
    %298 = vmatprep.subr.mxu0 0.0
    %299 = vmatpush2.msra.mxu0 0.0
    %300 = vmatprep.subr.mxu0 0.0
    %301 = vmatpush2.msra.mxu0 0.0
    %302 = vmatprep.subr.mxu0 0.0
    %303 = vmatpush2.msra.mxu0 0.0
    %304 = vmatprep.subr.mxu0 0.0
    %305 = vmatpush2.msra.mxu0 0.0
    %306 = vmatprep.subr.mxu0 0.0
    %307 = vmatpush2.msra.mxu0 0.0
    %308 = vmatprep.subr.mxu0 0.0
    %309 = vmatpush2.msra.mxu0 0.0
    %310 = vmatprep.subr.mxu0 0.0
    %311 = vmatpush2.msra.mxu0 0.0
    %312 = vmatprep.subr.mxu0 0.0
    %313 = vmatpush2.msra.mxu0 0.0
    %314 = vmatprep.subr.mxu0 0.0
    %315 = vmatpush2.msra.mxu0 0.0
    %316 = vmatprep.subr.mxu0 0.0
    %317 = vmatpush2.msra.mxu0 0.0
    %318 = vmatprep.subr.mxu0 0.0
    %319 = vmatpush2.msra.mxu0 0.0
    %320 = vmatprep.mubr.f32.mxu0 0.0
    %321 = vmatmul.mubr.f32.gmra.mxu0 %v233
    %v322 = vpop.f32.mrf.mxu0
    %v323 = vadd.f32 %v194, %v322
    %v324 = vpop.f32.mrf.mxu0
    %325 = vmatprep.mubr.f32.mxu0 0.0
    %326 = vmatmul.mubr.f32.gmra.mxu0 %v236
    %v327 = vpop.f32.mrf.mxu0
    %v328 = vadd.f32 %v199, %v327
    %v329 = vpop.f32.mrf.mxu0
    %330 = vmatprep.mubr.f32.mxu0 0.0
    %331 = vmatmul.mubr.f32.gmra.mxu0 %v239
    %v332 = vpop.f32.mrf.mxu0
    %v333 = vadd.f32 %v204, %v332
    %v334 = vpop.f32.mrf.mxu0
    %335 = vmatprep.mubr.f32.mxu0 0.0
    %336 = vmatmul.mubr.f32.gmra.mxu0 %v242
    %v337 = vpop.f32.mrf.mxu0
    %v338 = vadd.f32 %v209, %v337
    %v339 = vpop.f32.mrf.mxu0
    %340 = vmatprep.mubr.f32.mxu0 0.0
    %341 = vmatmul.mubr.f32.gmra.mxu0 %v245
    %v342 = vpop.f32.mrf.mxu0
    %v343 = vadd.f32 %v214, %v342
    %v344 = vpop.f32.mrf.mxu0
    %345 = vmatprep.mubr.f32.mxu0 0.0
    %346 = vmatmul.mubr.f32.gmra.mxu0 %v248
    %v347 = vpop.f32.mrf.mxu0
    %v348 = vadd.f32 %v219, %v347
    %v349 = vpop.f32.mrf.mxu0
    %350 = vmatprep.mubr.f32.mxu0 0.0
    %351 = vmatmul.mubr.f32.gmra.mxu0 %v251
    %v352 = vpop.f32.mrf.mxu0
    %v353 = vadd.f32 %v224, %v352
    %v354 = vpop.f32.mrf.mxu0
    %355 = vmatprep.mubr.f32.mxu0 0.0
    %356 = vmatmul.mubr.f32.gmra.mxu0 %v254
    %v357 = vpop.f32.mrf.mxu0
    %v358 = vadd.f32 %v229, %v357
    %v359 = vpop.f32.mrf.mxu0
    %360 = vdwg.mxu0
    %v361 = vmax.f32 %v323, 0.0
    %v362 = vmax.f32 %v328, 0.0
    %v363 = vmax.f32 %v333, 0.0
    %v364 = vmax.f32 %v338, 0.0
    %v365 = vmax.f32 %v343, 0.0
    %v366 = vmax.f32 %v348, 0.0
    %v367 = vmax.f32 %v353, 0.0
    %v368 = vmax.f32 %v358, 0.0
    %v369 = vld [vmem:[%s5] sm:$0x1]
    %v370 = vld [vmem:[#allocation2] sm:$0x1]
    %372 = vset.pattern.permute.xlu0 0
    %373 = vperm.xlu0 %372, %v370
    %v374 = vpop.permute.xlu0 %373
    %v376 = vlaneseq
    %v377 = vshrl.u32 %v376, 7
    %v378 = vsub.s32 0, %v377
    %v379 = vrot.slane %v374, %v378
    %vm380 = vcmask 523264
    %v382 = vsel %vm380, %v369, 0
    %384 = vmatprep.subr.mxu0 0.0
    %385 = vmatpush1.msra.mxu0 0.0
    %386 = vmatprep.subr.mxu0 0.0
    %387 = vmatpush1.msra.mxu0 0.0
    %388 = vmatprep.subr.mxu0 0.0
    %389 = vmatpush1.msra.mxu0 0.0
    %390 = vmatprep.subr.mxu0 0.0
    %391 = vmatpush1.msra.mxu0 0.0
    %392 = vmatprep.subr.mxu0 0.0
    %393 = vmatpush1.msra.mxu0 0.0
    %394 = vmatprep.subr.mxu0 0.0
    %395 = vmatpush1.msra.mxu0 0.0
    %396 = vmatprep.subr.mxu0 0.0
    %397 = vmatpush1.msra.mxu0 0.0
    %398 = vmatprep.subr.mxu0 0.0
    %399 = vmatpush1.msra.mxu0 0.0
    %400 = vmatprep.subr.mxu0 0.0
    %401 = vmatpush1.msra.mxu0 %v368
    %402 = vmatprep.subr.mxu0 0.0
    %403 = vmatpush1.msra.mxu0 %v367
    %404 = vmatprep.subr.mxu0 0.0
    %405 = vmatpush1.msra.mxu0 %v366
    %406 = vmatprep.subr.mxu0 0.0
    %407 = vmatpush1.msra.mxu0 %v365
    %408 = vmatprep.subr.mxu0 0.0
    %409 = vmatpush1.msra.mxu0 %v364
    %410 = vmatprep.subr.mxu0 0.0
    %411 = vmatpush1.msra.mxu0 %v363
    %412 = vmatprep.subr.mxu0 0.0
    %413 = vmatpush1.msra.mxu0 %v362
    %414 = vmatprep.subr.mxu0 0.0
    %415 = vmatpush1.msra.mxu0 %v361
    %416 = vmatprep.subr.mxu0 0.0
    %417 = vmatpush2.msra.mxu0 0.0
    %418 = vmatprep.subr.mxu0 0.0
    %419 = vmatpush2.msra.mxu0 0.0
    %420 = vmatprep.subr.mxu0 0.0
    %421 = vmatpush2.msra.mxu0 0.0
    %422 = vmatprep.subr.mxu0 0.0
    %423 = vmatpush2.msra.mxu0 0.0
    %424 = vmatprep.subr.mxu0 0.0
    %425 = vmatpush2.msra.mxu0 0.0
    %426 = vmatprep.subr.mxu0 0.0
    %427 = vmatpush2.msra.mxu0 0.0
    %428 = vmatprep.subr.mxu0 0.0
    %429 = vmatpush2.msra.mxu0 0.0
    %430 = vmatprep.subr.mxu0 0.0
    %431 = vmatpush2.msra.mxu0 0.0
    %432 = vmatprep.subr.mxu0 0.0
    %433 = vmatpush2.msra.mxu0 0.0
    %434 = vmatprep.subr.mxu0 0.0
    %435 = vmatpush2.msra.mxu0 0.0
    %436 = vmatprep.subr.mxu0 0.0
    %437 = vmatpush2.msra.mxu0 0.0
    %438 = vmatprep.subr.mxu0 0.0
    %439 = vmatpush2.msra.mxu0 0.0
    %440 = vmatprep.subr.mxu0 0.0
    %441 = vmatpush2.msra.mxu0 0.0
    %442 = vmatprep.subr.mxu0 0.0
    %443 = vmatpush2.msra.mxu0 0.0
    %444 = vmatprep.subr.mxu0 0.0
    %445 = vmatpush2.msra.mxu0 0.0
    %446 = vmatprep.subr.mxu0 0.0
    %447 = vmatpush2.msra.mxu0 0.0
    %448 = vmatprep.mubr.f32.mxu0 0.0
    %449 = vmatmul.mubr.f32.gmra.mxu0 %v382
    %v450 = vpop.f32.mrf.mxu0
    %v451 = vadd.f32 %v379, %v450
    %v452 = vpop.f32.mrf.mxu0
    %453 = vdwg.mxu0
    %v454 = vxor.u32 %v451, 2147483648
    %v455 = vmul.f32 %v454, 1.442695
    %v456 = vpow.pop %v455
    %v457 = vadd.f32 %v456, 1.0
    %v458 = vrcp.pop %v457
    %v459 = vmul.f32 1.0, %v458
    %460 = vst [vmem:[#allocation3] sm:$0x1] %v459
    // Predicated region
    $region30: #{nn_model_forward.1} parent=1 // pred_check
      _
    $region31: #{nn_model_forward.1} parent=1 // pred_check_branch
      %462 = sbr.rel (0) target = $region33
    $region32: #{nn_model_forward.1} parent=1 // pred_region
      %s464 = ssub.s32 16, 16
      %465 = vsyncadd [#allocation4], %s464
      %s467 = sshll.u32 [#allocation3], 4
      %s468 = int_to_ptr.vmem [resolvable:$true] %s467
      %470 = dma.vmem_to_hbm [thread:$0]  %s468, 16, %s7, [#allocation4]
    $region33: #{nn_model_forward.1} parent=1 // pred_fallthru
      _
    // Predicated region
    $region34: #{nn_model_forward.1} parent=1 // pred_check
      _
    $region35: #{nn_model_forward.1} parent=1 // pred_check_branch
      %472 = sbr.rel (0) target = $region37
    $region36: #{nn_model_forward.1} parent=1 // pred_region
      %473 = dma.done [#allocation4], 16
    $region37: #{nn_model_forward.1} parent=1 // pred_fallthru
      _
    %474 = vsyncpa [#allocation4], 1

</llo_original>
